<compile_context>
chip_gen: v7x
topology: tpu7x:2x2x1
jax: 0.10.0
libtpu: 0.0.40
codegen_flags: <defaults>
</compile_context>

<pallas_src>
import math

import jax
import jax.numpy as jnp
from jax.experimental import pallas as pl
from jax.experimental.pallas import tpu as pltpu


# --------------------------- fused forward kernel ----------------------------
def _build_fused_kernel(layer_num, input_dim, edge_dim, ghd):
    head = edge_dim + input_dim  # rows of each combined weight used by edge/X terms
    f32 = jnp.float32
    bf16 = jnp.bfloat16

    def kernel(node_ref, edge_ref, adj_ref, *rest):
        w_refs = rest[:layer_num]           # per-layer bf16 [edge_dim+input_dim+ghd*i, ghd]
        lin_w_ref = rest[layer_num]         # bf16 [hidden, output_dim]
        lin_b_ref = rest[layer_num + 1]     # f32  [1, output_dim]
        out_ref = rest[layer_num + 2]       # f32  [N, output_dim]
        ag_scratch = rest[layer_num + 3]    # bf16 [N, (L-1)*ghd] persistent VMEM scratch

        x_bf = node_ref[...]                # [N, input_dim] bf16
        adj_bf = adj_ref[...]               # [N, N] bf16 (0/1 -> exact)

        # ---- layer-invariant prologue (hoisted out of the per-layer loop) ----
        # Edge mean kept in f32 (tiny at this E). For large E, fold 1/E into W_edge
        # and reduce the edge slab while streaming row-blocks instead.
        edge_mean = jnp.mean(edge_ref[...].astype(f32), axis=1)           # [N, edge_dim]
        edge_mean_bf = edge_mean.astype(bf16)
        ax_bf = jnp.dot(adj_bf, x_bf, preferred_element_type=f32).astype(bf16)  # A@X
        deg = jnp.sum(adj_bf.astype(f32), axis=1, keepdims=True)          # [N, 1]
        deg = deg + (deg == 0.0).astype(f32)                              # zero-degree -> 1
        inv_deg = 1.0 / deg                                               # exact (parity w/ ref)

        # Residual folded into the final Linear: out = x@linW + sum_i g_i@linW_i + b
        out_acc = jnp.dot(x_bf, lin_w_ref[...], preferred_element_type=f32) + lin_b_ref[...]

        # ---- stacked GraphConv layers (intermediates stay in VMEM/vregs) ----
        for i in range(layer_num):
            w_e = w_refs[i][:edge_dim, :]                                 # [edge_dim, ghd]
            w_x = w_refs[i][edge_dim:head, :]                             # [input_dim, ghd]
            acc = jnp.dot(edge_mean_bf, w_e, preferred_element_type=f32)
            acc = acc + jnp.dot(ax_bf, w_x, preferred_element_type=f32)
            if i > 0:
                # one dot over the contiguous cached A@g_{0..i-1} slab (K = i*ghd)
                w_prev = w_refs[i][head:head + i * ghd, :]                # [i*ghd, ghd]
                acc = acc + jnp.dot(ag_scratch[:, :i * ghd], w_prev,
                                    preferred_element_type=f32)
            # bias=False; divide-by-degree then fused torch.relu (Dropout = identity)
            g = jnp.maximum(acc * inv_deg, 0.0)                           # f32 [N, ghd]
            g_bf = g.astype(bf16)
            if i + 1 < layer_num:
                # cache A @ g_i exactly once for all later layers
                ag = jnp.dot(adj_bf, g_bf, preferred_element_type=f32)
                ag_scratch[:, i * ghd:(i + 1) * ghd] = ag.astype(bf16)
            # accumulate this layer's slice of the final Linear
            out_acc = out_acc + jnp.dot(g_bf, lin_w_ref[i * ghd:(i + 1) * ghd, :],
                                        preferred_element_type=f32)

        out_ref[...] = out_acc                                            # single HBM store

    return kernel


# ------------------------------ pallas wrappers -------------------------------
def graph_convolution_forward_batched(params, node_feat, edge_feat, adj):
    """node_feat [B,N,D], edge_feat [B,N,E,D], adj [B,N,N] -> [B,N,output_dim]."""
    B, N, input_dim = node_feat.shape
    E = edge_feat.shape[2]
    edge_dim = edge_feat.shape[-1]
    layer_ws = [lp["w_comb_bf16"] for lp in params["layers"]]
    layer_num = len(layer_ws)
    ghd = layer_ws[0].shape[1]
    lin_w = params["lin_w_bf16"]
    lin_b = params["lin_b"]
    hidden_dim, output_dim = lin_w.shape
    assert hidden_dim == ghd * layer_num
    assert hidden_dim == input_dim, "residual add requires hidden_dim == input_dim"
    assert edge_dim == input_dim

    # bf16 MXU feeds; adj is 0/1 so exact, also halves HBM->VMEM bytes at scale.
    node_bf = node_feat.astype(jnp.bfloat16)
    edge_bf = edge_feat.astype(jnp.bfloat16)
    adj_bf = adj.astype(jnp.bfloat16)

    kernel = _build_fused_kernel(layer_num, input_dim, edge_dim, ghd)

    def _const_spec(shape):  # whole-array, grid-invariant (weights/bias)
        nd = len(shape)
        return pl.BlockSpec(shape, lambda b, _nd=nd: (0,) * _nd)

    in_specs = [
        pl.BlockSpec((None, N, input_dim), lambda b: (b, 0, 0)),          # node_feat
        pl.BlockSpec((None, N, E, edge_dim), lambda b: (b, 0, 0, 0)),     # edge_feat
        pl.BlockSpec((None, N, N), lambda b: (b, 0, 0)),                  # adj
    ] + [_const_spec(w.shape) for w in layer_ws] + [
        _const_spec(lin_w.shape), _const_spec(lin_b.shape)]
    out_specs = pl.BlockSpec((None, N, output_dim), lambda b: (b, 0, 0))

    grid_spec = pltpu.PrefetchScalarGridSpec(
        num_scalar_prefetch=0,
        grid=(B,),                                  # one graph per step; pipelined DMAs
        in_specs=in_specs,
        out_specs=out_specs,
        scratch_shapes=[pltpu.VMEM((N, max(layer_num - 1, 1) * ghd), jnp.bfloat16)],
    )
    return pl.pallas_call(
        kernel,
        out_shape=jax.ShapeDtypeStruct((B, N, output_dim), jnp.float32),
        grid_spec=grid_spec,
        compiler_params=pltpu.CompilerParams(
            dimension_semantics=("parallel",),       # megacore-shard graphs on v7x
            vmem_limit_bytes=32 * 1024 * 1024,       # explicit budget; re-derive for v7x at scale
        ),
    )(node_bf, edge_bf, adj_bf, *layer_ws, lin_w, lin_b)


def graph_convolution_forward(params, node_feat, edge_feat, adj):
    """Single graph, matching the PyTorch module's forward signature."""
    out = graph_convolution_forward_batched(
        params, node_feat[None], edge_feat[None], adj[None])
    return out[0]


# ----------------------------- parameter setup -------------------------------
def xavier_uniform(key, shape):
    fan_in, fan_out = shape
    bound = math.sqrt(6.0 / (fan_in + fan_out))
    return jax.random.uniform(key, shape, jnp.float32, -bound, bound)


def init_params(key, layer_num, input_dim, output_dim):
    hidden_dim = output_dim
    assert hidden_dim % layer_num == 0
    ghd = hidden_dim // layer_num  # graph_hidden_dim
    edge_dim = input_dim
    params = {"layers": []}
    for i in range(layer_num):
        key, k1, k2 = jax.random.split(key, 3)
        d_in = input_dim + ghd * i
        w_edge = xavier_uniform(k1, (edge_dim, ghd))
        w_node = xavier_uniform(k2, (d_in, ghd))
        params["layers"].append({
            "w_edge": w_edge,                       # f32 masters (reference / parity)
            "w_node": w_node,
            # pre-stacked [W_edge ; W_node] once at init; bf16 copy feeds the MXU
            "w_comb_bf16": jnp.concatenate([w_edge, w_node], axis=0).astype(jnp.bfloat16),
        })
    key, k1, k2 = jax.random.split(key, 3)
    bound = 1.0 / math.sqrt(hidden_dim)
    params["lin_w"] = jax.random.uniform(k1, (hidden_dim, output_dim),
                                         jnp.float32, -bound, bound)
    params["lin_b"] = jax.random.uniform(k2, (1, output_dim),
                                         jnp.float32, -bound, bound)
    params["lin_w_bf16"] = params["lin_w"].astype(jnp.bfloat16)
    return params


# ------------------------------- pure-JAX ref ---------------------------------
def _ref_graph_conv(x, e, a, we, wn):
    oe = jnp.mean(jnp.einsum('ijk,kp->ijp', e, we), axis=1)
    on = a @ x @ wn
    out = oe + on
    deg = jnp.sum(a, axis=1)
    deg = deg + (deg == 0.0).astype(jnp.float32)
    return out / deg[:, None]


def _ref_forward(params, node_feat, edge_feat, adj):
    outputs = node_feat
    cache_list = [outputs]
    output_list = []
    for lp in params["layers"]:
        g = jnp.maximum(
            _ref_graph_conv(outputs, edge_feat, adj, lp["w_edge"], lp["w_node"]), 0.0)
        cache_list.append(g)
        outputs = jnp.concatenate(cache_list, axis=-1)
        output_list.append(g)  # Dropout(0.2) is identity at inference
    y = jnp.concatenate(output_list, axis=-1) + node_feat
    return y @ params["lin_w"] + params["lin_b"]


# ----------------------------------- main -------------------------------------
if __name__ == "__main__":
    layer_num = 2
    input_dim = 32     # must equal output_dim for the residual add in the module
    output_dim = 32
    N = 8              # num_entity
    E = 8              # edges per entity
    B = 2              # graphs batched onto the 'parallel' grid axis

    key = jax.random.PRNGKey(0)
    kp, kn, ke, ka = jax.random.split(key, 4)

    params = init_params(kp, layer_num, input_dim, output_dim)
    node_feat = jax.random.normal(kn, (B, N, input_dim), jnp.float32)
    edge_feat = jax.random.normal(ke, (B, N, E, input_dim), jnp.float32)
    adj = (jax.random.uniform(ka, (B, N, N)) > 0.5).astype(jnp.float32)
    adj = adj.at[0, 0].set(0.0)  # exercise the zero-degree path

    # Batched call (grid over graphs, dimension_semantics=("parallel",)).
    out_b = jax.block_until_ready(
        graph_convolution_forward_batched(params, node_feat, edge_feat, adj))
    ref_b = jax.vmap(lambda n, e, a: _ref_forward(params, n, e, a))(node_feat, edge_feat, adj)
    assert out_b.shape == (B, N, output_dim)
    # bf16 MXU feeds (f32 accumulation) vs. pure-f32 reference -> ~1e-2-level parity.
    assert jnp.allclose(out_b, ref_b, atol=5e-2, rtol=5e-2), "batched mismatch vs reference"

    # Single-graph path (matches the PyTorch module's forward signature).
    out_1 = jax.block_until_ready(
        graph_convolution_forward(params, node_feat[0], edge_feat[0], adj[0]))
    ref_1 = _ref_forward(params, node_feat[0], edge_feat[0], adj[0])
    assert out_1.shape == (N, output_dim)
    assert jnp.allclose(out_1, ref_1, atol=5e-2, rtol=5e-2), "single-graph mismatch vs reference"

    print("KERNEL_OK")
</pallas_src>

<mosaic_0001>
module attributes {stable_mosaic.version = 11 : i64} {
  func.func @kernel(%arg0: i32, %arg1: memref<1x8x32xbf16, #tpu.memory_space<vmem>>, %arg2: memref<1x8x8x32xbf16, #tpu.memory_space<vmem>>, %arg3: memref<1x8x8xbf16, #tpu.memory_space<vmem>>, %arg4: memref<64x16xbf16, #tpu.memory_space<vmem>>, %arg5: memref<80x16xbf16, #tpu.memory_space<vmem>>, %arg6: memref<32x32xbf16, #tpu.memory_space<vmem>>, %arg7: memref<1x32xf32, #tpu.memory_space<vmem>>, %arg8: memref<1x8x32xf32, #tpu.memory_space<vmem>>, %arg9: memref<8x16xbf16, #tpu.memory_space<vmem>>) attributes {dimension_semantics = [#tpu.dimension_semantics<parallel>], iteration_bounds = array<i64: 2>, scalar_prefetch = 0 : i64, scratch_operands = 1 : i64, tpu.core_type = #tpu.core_type<tc>, window_params = [{transform_indices = @transform_0, window_bounds = array<i64: 1, 8, 32>}, {transform_indices = @transform_1, window_bounds = array<i64: 1, 8, 8, 32>}, {transform_indices = @transform_2, window_bounds = array<i64: 1, 8, 8>}, {pipeline_mode = #tpu.pipeline_mode<synchronous>, transform_indices = @transform_3, window_bounds = array<i64: 64, 16>}, {pipeline_mode = #tpu.pipeline_mode<synchronous>, transform_indices = @transform_4, window_bounds = array<i64: 80, 16>}, {pipeline_mode = #tpu.pipeline_mode<synchronous>, transform_indices = @transform_5, window_bounds = array<i64: 32, 32>}, {pipeline_mode = #tpu.pipeline_mode<synchronous>, transform_indices = @transform_6, window_bounds = array<i64: 1, 32>}, {transform_indices = @transform_7, window_bounds = array<i64: 1, 8, 32>}]} {
    %c0 = arith.constant 0 : index
    %c0_0 = arith.constant 0 : index
    %c0_1 = arith.constant 0 : index
    %0 = vector.load %arg1[%c0, %c0_0, %c0_1] : memref<1x8x32xbf16, #tpu.memory_space<vmem>>, vector<1x8x32xbf16>
    %1 = vector.shape_cast %0 : vector<1x8x32xbf16> to vector<8x32xbf16>
    %c0_2 = arith.constant 0 : index
    %c0_3 = arith.constant 0 : index
    %c0_4 = arith.constant 0 : index
    %2 = vector.load %arg3[%c0_2, %c0_3, %c0_4] : memref<1x8x8xbf16, #tpu.memory_space<vmem>>, vector<1x8x8xbf16>
    %3 = vector.shape_cast %2 : vector<1x8x8xbf16> to vector<8x8xbf16>
    %c0_5 = arith.constant 0 : index
    %c0_6 = arith.constant 0 : index
    %c0_7 = arith.constant 0 : index
    %c0_8 = arith.constant 0 : index
    %4 = vector.load %arg2[%c0_5, %c0_6, %c0_7, %c0_8] : memref<1x8x8x32xbf16, #tpu.memory_space<vmem>>, vector<1x8x8x32xbf16>
    %5 = vector.shape_cast %4 : vector<1x8x8x32xbf16> to vector<8x8x32xbf16>
    %6 = arith.extf %5 : vector<8x8x32xbf16> to vector<8x8x32xf32>
    %cst = arith.constant dense<0.000000e+00> : vector<8x32xf32>
    %7 = vector.multi_reduction <add>, %6, %cst [1] : vector<8x8x32xf32> to vector<8x32xf32>
    %cst_9 = arith.constant 8.000000e+00 : f32
    %8 = vector.broadcast %cst_9 : f32 to vector<8x32xf32>
    %9 = arith.divf %7, %8 : vector<8x32xf32>
    %10 = arith.truncf %9 : vector<8x32xf32> to vector<8x32xbf16>
    %cst_10 = arith.constant dense<0.000000e+00> : vector<8x32xf32>
    %11 = tpu.matmul %3, %1, %cst_10 {dimension_numbers = #tpu.dot_dimension_numbers<[1], [0], [0], [1], [0, 0, 1, 1], [], []>} : vector<8x8xbf16>, vector<8x32xbf16>, vector<8x32xf32> -> vector<8x32xf32>
    %12 = arith.truncf %11 : vector<8x32xf32> to vector<8x32xbf16>
    %13 = arith.extf %3 : vector<8x8xbf16> to vector<8x8xf32>
    %cst_11 = arith.constant dense<0.000000e+00> : vector<8xf32>
    %14 = vector.multi_reduction <add>, %13, %cst_11 [1] : vector<8x8xf32> to vector<8xf32>
    %15 = vector.shape_cast %14 : vector<8xf32> to vector<8x1xf32>
    %cst_12 = arith.constant 0.000000e+00 : f32
    %16 = vector.broadcast %cst_12 : f32 to vector<8x1xf32>
    %17 = arith.cmpf oeq, %15, %16 : vector<8x1xf32>
    %18 = arith.extui %17 : vector<8x1xi1> to vector<8x1xi32>
    %19 = arith.sitofp %18 : vector<8x1xi32> to vector<8x1xf32>
    %20 = arith.addf %15, %19 : vector<8x1xf32>
    %cst_13 = arith.constant 1.000000e+00 : f32
    %21 = vector.broadcast %cst_13 : f32 to vector<8x1xf32>
    %22 = arith.divf %21, %20 : vector<8x1xf32>
    %c0_14 = arith.constant 0 : index
    %c0_15 = arith.constant 0 : index
    %23 = vector.load %arg6[%c0_14, %c0_15] : memref<32x32xbf16, #tpu.memory_space<vmem>>, vector<32x32xbf16>
    %cst_16 = arith.constant dense<0.000000e+00> : vector<8x32xf32>
    %24 = tpu.matmul %1, %23, %cst_16 {dimension_numbers = #tpu.dot_dimension_numbers<[1], [0], [0], [1], [0, 0, 1, 1], [], []>} : vector<8x32xbf16>, vector<32x32xbf16>, vector<8x32xf32> -> vector<8x32xf32>
    %c0_17 = arith.constant 0 : index
    %c0_18 = arith.constant 0 : index
    %25 = vector.load %arg7[%c0_17, %c0_18] : memref<1x32xf32, #tpu.memory_space<vmem>>, vector<1x32xf32>
    %26 = vector.broadcast %25 : vector<1x32xf32> to vector<8x32xf32>
    %27 = arith.addf %24, %26 : vector<8x32xf32>
    %c0_19 = arith.constant 0 : index
    %c0_20 = arith.constant 0 : index
    %28 = vector.load %arg4[%c0_19, %c0_20] : memref<64x16xbf16, #tpu.memory_space<vmem>>, vector<32x16xbf16>
    %c32 = arith.constant 32 : index
    %c0_21 = arith.constant 0 : index
    %29 = vector.load %arg4[%c32, %c0_21] : memref<64x16xbf16, #tpu.memory_space<vmem>>, vector<32x16xbf16>
    %cst_22 = arith.constant dense<0.000000e+00> : vector<8x16xf32>
    %30 = tpu.matmul %10, %28, %cst_22 {dimension_numbers = #tpu.dot_dimension_numbers<[1], [0], [0], [1], [0, 0, 1, 1], [], []>} : vector<8x32xbf16>, vector<32x16xbf16>, vector<8x16xf32> -> vector<8x16xf32>
    %cst_23 = arith.constant dense<0.000000e+00> : vector<8x16xf32>
    %31 = tpu.matmul %12, %29, %cst_23 {dimension_numbers = #tpu.dot_dimension_numbers<[1], [0], [0], [1], [0, 0, 1, 1], [], []>} : vector<8x32xbf16>, vector<32x16xbf16>, vector<8x16xf32> -> vector<8x16xf32>
    %32 = arith.addf %30, %31 : vector<8x16xf32>
    %33 = vector.broadcast %22 : vector<8x1xf32> to vector<8x16xf32>
    %34 = arith.mulf %32, %33 : vector<8x16xf32>
    %cst_24 = arith.constant 0.000000e+00 : f32
    %35 = vector.broadcast %cst_24 : f32 to vector<8x16xf32>
    %36 = arith.maximumf %34, %35 : vector<8x16xf32>
    %37 = arith.truncf %36 : vector<8x16xf32> to vector<8x16xbf16>
    %cst_25 = arith.constant dense<0.000000e+00> : vector<8x16xf32>
    %38 = tpu.matmul %3, %37, %cst_25 {dimension_numbers = #tpu.dot_dimension_numbers<[1], [0], [0], [1], [0, 0, 1, 1], [], []>} : vector<8x8xbf16>, vector<8x16xbf16>, vector<8x16xf32> -> vector<8x16xf32>
    %39 = arith.truncf %38 : vector<8x16xf32> to vector<8x16xbf16>
    %c0_26 = arith.constant 0 : index
    %c0_27 = arith.constant 0 : index
    %40 = vector.load %arg9[%c0_26, %c0_27] : memref<8x16xbf16, #tpu.memory_space<vmem>>, vector<8x16xbf16>
    tpu.vector_store %arg9[%c0_26, %c0_27], %39 {strides = array<i32>} : memref<8x16xbf16, #tpu.memory_space<vmem>>, vector<8x16xbf16>,
    %c0_28 = arith.constant 0 : index
    %c0_29 = arith.constant 0 : index
    %41 = vector.load %arg6[%c0_28, %c0_29] : memref<32x32xbf16, #tpu.memory_space<vmem>>, vector<16x32xbf16>
    %cst_30 = arith.constant dense<0.000000e+00> : vector<8x32xf32>
    %42 = tpu.matmul %37, %41, %cst_30 {dimension_numbers = #tpu.dot_dimension_numbers<[1], [0], [0], [1], [0, 0, 1, 1], [], []>} : vector<8x16xbf16>, vector<16x32xbf16>, vector<8x32xf32> -> vector<8x32xf32>
    %43 = arith.addf %27, %42 : vector<8x32xf32>
    %c0_31 = arith.constant 0 : index
    %c0_32 = arith.constant 0 : index
    %44 = vector.load %arg5[%c0_31, %c0_32] : memref<80x16xbf16, #tpu.memory_space<vmem>>, vector<32x16xbf16>
    %c32_33 = arith.constant 32 : index
    %c0_34 = arith.constant 0 : index
    %45 = vector.load %arg5[%c32_33, %c0_34] : memref<80x16xbf16, #tpu.memory_space<vmem>>, vector<32x16xbf16>
    %cst_35 = arith.constant dense<0.000000e+00> : vector<8x16xf32>
    %46 = tpu.matmul %10, %44, %cst_35 {dimension_numbers = #tpu.dot_dimension_numbers<[1], [0], [0], [1], [0, 0, 1, 1], [], []>} : vector<8x32xbf16>, vector<32x16xbf16>, vector<8x16xf32> -> vector<8x16xf32>
    %cst_36 = arith.constant dense<0.000000e+00> : vector<8x16xf32>
    %47 = tpu.matmul %12, %45, %cst_36 {dimension_numbers = #tpu.dot_dimension_numbers<[1], [0], [0], [1], [0, 0, 1, 1], [], []>} : vector<8x32xbf16>, vector<32x16xbf16>, vector<8x16xf32> -> vector<8x16xf32>
    %48 = arith.addf %46, %47 : vector<8x16xf32>
    %c64 = arith.constant 64 : index
    %c0_37 = arith.constant 0 : index
    %49 = vector.load %arg5[%c64, %c0_37] : memref<80x16xbf16, #tpu.memory_space<vmem>>, vector<16x16xbf16>
    %c0_38 = arith.constant 0 : index
    %c0_39 = arith.constant 0 : index
    %50 = vector.load %arg9[%c0_38, %c0_39] : memref<8x16xbf16, #tpu.memory_space<vmem>>, vector<8x16xbf16>
    %cst_40 = arith.constant dense<0.000000e+00> : vector<8x16xf32>
    %51 = tpu.matmul %50, %49, %cst_40 {dimension_numbers = #tpu.dot_dimension_numbers<[1], [0], [0], [1], [0, 0, 1, 1], [], []>} : vector<8x16xbf16>, vector<16x16xbf16>, vector<8x16xf32> -> vector<8x16xf32>
    %52 = arith.addf %48, %51 : vector<8x16xf32>
    %53 = vector.broadcast %22 : vector<8x1xf32> to vector<8x16xf32>
    %54 = arith.mulf %52, %53 : vector<8x16xf32>
    %cst_41 = arith.constant 0.000000e+00 : f32
    %55 = vector.broadcast %cst_41 : f32 to vector<8x16xf32>
    %56 = arith.maximumf %54, %55 : vector<8x16xf32>
    %57 = arith.truncf %56 : vector<8x16xf32> to vector<8x16xbf16>
    %c16 = arith.constant 16 : index
    %c0_42 = arith.constant 0 : index
    %58 = vector.load %arg6[%c16, %c0_42] : memref<32x32xbf16, #tpu.memory_space<vmem>>, vector<16x32xbf16>
    %cst_43 = arith.constant dense<0.000000e+00> : vector<8x32xf32>
    %59 = tpu.matmul %57, %58, %cst_43 {dimension_numbers = #tpu.dot_dimension_numbers<[1], [0], [0], [1], [0, 0, 1, 1], [], []>} : vector<8x16xbf16>, vector<16x32xbf16>, vector<8x32xf32> -> vector<8x32xf32>
    %60 = arith.addf %43, %59 : vector<8x32xf32>
    %c0_44 = arith.constant 0 : index
    %c0_45 = arith.constant 0 : index
    %c0_46 = arith.constant 0 : index
    %61 = vector.load %arg8[%c0_44, %c0_45, %c0_46] : memref<1x8x32xf32, #tpu.memory_space<vmem>>, vector<1x8x32xf32>
    %62 = vector.shape_cast %61 : vector<1x8x32xf32> to vector<8x32xf32>
    %63 = vector.shape_cast %60 : vector<8x32xf32> to vector<1x8x32xf32>
    tpu.vector_store %arg8[%c0_44, %c0_45, %c0_46], %63 {strides = array<i32>} : memref<1x8x32xf32, #tpu.memory_space<vmem>>, vector<1x8x32xf32>,
    return
  }
  func.func @transform_0(%arg0: i32) -> (i32, i32, i32) {
    %c0_i32 = arith.constant 0 : i32
    %c0_i32_0 = arith.constant 0 : i32
    %c0_i32_1 = arith.constant 0 : i32
    return %arg0, %c0_i32, %c0_i32_0 : i32, i32, i32
  }
  func.func @transform_1(%arg0: i32) -> (i32, i32, i32, i32) {
    %c0_i32 = arith.constant 0 : i32
    %c0_i32_0 = arith.constant 0 : i32
    %c0_i32_1 = arith.constant 0 : i32
    %c0_i32_2 = arith.constant 0 : i32
    return %arg0, %c0_i32, %c0_i32_0, %c0_i32_1 : i32, i32, i32, i32
  }
  func.func @transform_2(%arg0: i32) -> (i32, i32, i32) {
    %c0_i32 = arith.constant 0 : i32
    %c0_i32_0 = arith.constant 0 : i32
    %c0_i32_1 = arith.constant 0 : i32
    return %arg0, %c0_i32, %c0_i32_0 : i32, i32, i32
  }
  func.func @transform_3(%arg0: i32) -> (i32, i32) {
    %c0_i32 = arith.constant 0 : i32
    %c0_i32_0 = arith.constant 0 : i32
    %c0_i32_1 = arith.constant 0 : i32
    return %c0_i32, %c0_i32_0 : i32, i32
  }
  func.func @transform_4(%arg0: i32) -> (i32, i32) {
    %c0_i32 = arith.constant 0 : i32
    %c0_i32_0 = arith.constant 0 : i32
    %c0_i32_1 = arith.constant 0 : i32
    return %c0_i32, %c0_i32_0 : i32, i32
  }
  func.func @transform_5(%arg0: i32) -> (i32, i32) {
    %c0_i32 = arith.constant 0 : i32
    %c0_i32_0 = arith.constant 0 : i32
    %c0_i32_1 = arith.constant 0 : i32
    return %c0_i32, %c0_i32_0 : i32, i32
  }
  func.func @transform_6(%arg0: i32) -> (i32, i32) {
    %c0_i32 = arith.constant 0 : i32
    %c0_i32_0 = arith.constant 0 : i32
    %c0_i32_1 = arith.constant 0 : i32
    return %c0_i32, %c0_i32_0 : i32, i32
  }
  func.func @transform_7(%arg0: i32) -> (i32, i32, i32) {
    %c0_i32 = arith.constant 0 : i32
    %c0_i32_0 = arith.constant 0 : i32
    %c0_i32_1 = arith.constant 0 : i32
    return %arg0, %c0_i32, %c0_i32_0 : i32, i32, i32
  }
}

</mosaic_0001>

<llo_original>
// kernel: tpu_custom_call.1
$region0: #{tpu_custom_call.1}
  #allocation0 [shape = 'u32[]', space=smem, size = 0x4, offset = 0x4, fixed_abs, tag = 'smem constant byte address 0x4 - core index']
  #allocation1 [shape = 'u32[144,128]{1,0:T(1,128)}', space=vmem, size = 0x12000, scoped, tag = 'internal scratch']
  #allocation2 [shape = 'bf16[8,16]{1,0:T(8,128)(2,1)}', space=vmem, size = 0x800, scoped, tag = 'scratch operand']
  %s0 = inlined_call_operand.vmem [shape: bf16[2,8,32], index: 0, kind: input, shape index: {}]
  %s1 = inlined_call_operand.vmem [shape: bf16[2,8,8,32], index: 1, kind: input, shape index: {}]
  %s2 = inlined_call_operand.hbm [shape: bf16[2,8,8], index: 2, kind: input, shape index: {}]
  %s3 = inlined_call_operand.vmem [shape: bf16[64,16], index: 3, kind: input, shape index: {}]
  %s4 = inlined_call_operand.vmem [shape: bf16[80,16], index: 4, kind: input, shape index: {}]
  %s5 = inlined_call_operand.vmem [shape: bf16[32,32], index: 5, kind: input, shape index: {}]
  %s6 = inlined_call_operand.vmem [shape: f32[1,32], index: 6, kind: input, shape index: {}]
  %s7 = inlined_call_operand.hbm [shape: f32[2,8,32], index: 7, kind: output, shape index: {}]
  %s8 = sld [smem:[#allocation0]]
  $region65: #{tpu_custom_call.1} parent=0
    _
  %s10 = ssub.s32 1, %s8
  %s11 = scalar_select 0, %s10, %s8
  $region1: #{tpu_custom_call.1} parent=0
    #allocation3 [shape = 'u8[4096]{0}', space=vmem, size = 0x1000, scoped, tag = 'input window, operand 2']
    #allocation4 [shape = 's32[2]{0}', space=sflag, size = 0x8, scoped, tag = 'scoped memory for tpu_custom_call.1']
    #allocation5 [shape = 's32[2]{0}', space=sflag, size = 0x8, scoped, tag = 'scoped memory for tpu_custom_call.1']
    #allocation6 [shape = 'u8[8192]{0}', space=vmem, size = 0x2000, scoped, tag = 'output window, operand 0']
    %12 = vsyncpa [#allocation4], 0
    %s13 = scalar_lea.sflag [#allocation4], 1
    %14 = vsyncpa %s13, 0
    %15 = vsyncpa [#allocation5], 0
    %s16 = scalar_lea.sflag [#allocation5], 1
    %17 = vsyncpa %s16, 0
    loop: start=0, step=1, limit=4
    $region2: #{tpu_custom_call.1} parent=1 // loop_pre_header
      _
    $region3: #{tpu_custom_call.1} parent=1 // loop_header
      %s19 = sphi 0, %s23
      %p20 = scmp.ge.s32.totalorder %s19, 4
      %s29 = sphi 0, %s31
      %s32 = sphi 0, %s29
      %s33 = sphi 0, %s32
      %s49 = sphi 0, %s33
      %s55 = sphi 0, %s57
      %s58 = sphi 0, %s55
      %s59 = sphi 0, %s58
      %s75 = sphi 0, %s59
      %s81 = sphi 0, %s83
      %s84 = sphi 0, %s81
      %s85 = sphi 0, %s84
      %s101 = sphi 0, %s85
      %s105 = sphi 0, %s105
      %s107 = sphi 0, %s105
      %s108 = sphi 0, %s107
      %s122 = sphi 0, %s108
      %s126 = sphi 0, %s126
      %s128 = sphi 0, %s126
      %s129 = sphi 0, %s128
      %s143 = sphi 0, %s129
      %s147 = sphi 0, %s147
      %s149 = sphi 0, %s147
      %s150 = sphi 0, %s149
      %s164 = sphi 0, %s150
      %s168 = sphi 0, %s168
      %s170 = sphi 0, %s168
      %s171 = sphi 0, %s170
      %s185 = sphi 0, %s171
      %s191 = sphi 0, %s193
      %s194 = sphi 0, %s191
      %s195 = sphi 0, %s194
      %s211 = sphi 0, %s195
    $region4: #{tpu_custom_call.1} parent=1 // loop_header_branch
      %22 = sbr.rel (%p20) target = $region8
    $region5: #{tpu_custom_call.1} parent=1 // loop_body
      %s24 = ssub.s32 %s19, 1
      %s25 = ssub.s32 %s19, 2
      %s26 = sadd.s32 %s19, 1
      %s27 = ssub.s32 %s19, %s26
      %p28 = scmp.eq.s32.totalorder %s27, 0
      %s30 = sadd.s32 %s29, 1
      %s31 = scalar_select %p28, %s29, %s30
      %p34 = pneg %p28
      %p35 = scmp.eq.s32.totalorder %s19, 1
      %p36 = por %p34, %p35
      %p37 = scmp.ne.s32.totalorder %s29, %s32
      %p38 = scmp.eq.s32.totalorder %s19, 0
      %p39 = por %p37, %p38
      %p40 = scmp.ne.s32.totalorder %s29, %s32
      %p41 = scmp.eq.s32.totalorder %s24, 1
      %p42 = por %p40, %p41
      %p43 = scmp.ne.s32.totalorder %s32, %s33
      %p44 = scmp.eq.s32.totalorder %s24, 0
      %p45 = por %p43, %p44
      %p46 = scmp.ne.s32.totalorder %s32, %s33
      %p47 = scmp.eq.s32.totalorder %s25, 1
      %p48 = por %p46, %p47
      %p50 = scmp.ne.s32.totalorder %s33, %s49
      %p51 = scmp.eq.s32.totalorder %s25, 0
      %p52 = por %p50, %p51
      %s53 = ssub.s32 %s19, %s26
      %p54 = scmp.eq.s32.totalorder %s53, 0
      %s56 = sadd.s32 %s55, 1
      %s57 = scalar_select %p54, %s55, %s56
      %p60 = pneg %p54
      %p61 = scmp.eq.s32.totalorder %s19, 1
      %p62 = por %p60, %p61
      %p63 = scmp.ne.s32.totalorder %s55, %s58
      %p64 = scmp.eq.s32.totalorder %s19, 0
      %p65 = por %p63, %p64
      %p66 = scmp.ne.s32.totalorder %s55, %s58
      %p67 = scmp.eq.s32.totalorder %s24, 1
      %p68 = por %p66, %p67
      %p69 = scmp.ne.s32.totalorder %s58, %s59
      %p70 = scmp.eq.s32.totalorder %s24, 0
      %p71 = por %p69, %p70
      %p72 = scmp.ne.s32.totalorder %s58, %s59
      %p73 = scmp.eq.s32.totalorder %s25, 1
      %p74 = por %p72, %p73
      %p76 = scmp.ne.s32.totalorder %s59, %s75
      %p77 = scmp.eq.s32.totalorder %s25, 0
      %p78 = por %p76, %p77
      %s79 = ssub.s32 %s19, %s26
      %p80 = scmp.eq.s32.totalorder %s79, 0
      %s82 = sadd.s32 %s81, 1
      %s83 = scalar_select %p80, %s81, %s82
      %p86 = pneg %p80
      %p87 = scmp.eq.s32.totalorder %s19, 1
      %p88 = por %p86, %p87
      %p89 = scmp.ne.s32.totalorder %s81, %s84
      %p90 = scmp.eq.s32.totalorder %s19, 0
      %p91 = por %p89, %p90
      %p92 = scmp.ne.s32.totalorder %s81, %s84
      %p93 = scmp.eq.s32.totalorder %s24, 1
      %p94 = por %p92, %p93
      %p95 = scmp.ne.s32.totalorder %s84, %s85
      %p96 = scmp.eq.s32.totalorder %s24, 0
      %p97 = por %p95, %p96
      %p98 = scmp.ne.s32.totalorder %s84, %s85
      %p99 = scmp.eq.s32.totalorder %s25, 1
      %p100 = por %p98, %p99
      %p102 = scmp.ne.s32.totalorder %s85, %s101
      %p103 = scmp.eq.s32.totalorder %s25, 0
      %p104 = por %p102, %p103
      %s106 = sadd.s32 %s105, 1
      %p109 = scmp.eq.s32.totalorder %s19, 1
      %p110 = scmp.ne.s32.totalorder %s105, %s107
      %p111 = scmp.eq.s32.totalorder %s19, 0
      %p112 = por %p110, %p111
      %p113 = scmp.ne.s32.totalorder %s105, %s107
      %p114 = scmp.eq.s32.totalorder %s24, 1
      %p115 = por %p113, %p114
      %p116 = scmp.ne.s32.totalorder %s107, %s108
      %p117 = scmp.eq.s32.totalorder %s24, 0
      %p118 = por %p116, %p117
      %p119 = scmp.ne.s32.totalorder %s107, %s108
      %p120 = scmp.eq.s32.totalorder %s25, 1
      %p121 = por %p119, %p120
      %p123 = scmp.ne.s32.totalorder %s108, %s122
      %p124 = scmp.eq.s32.totalorder %s25, 0
      %p125 = por %p123, %p124
      %s127 = sadd.s32 %s126, 1
      %p130 = scmp.eq.s32.totalorder %s19, 1
      %p131 = scmp.ne.s32.totalorder %s126, %s128
      %p132 = scmp.eq.s32.totalorder %s19, 0
      %p133 = por %p131, %p132
      %p134 = scmp.ne.s32.totalorder %s126, %s128
      %p135 = scmp.eq.s32.totalorder %s24, 1
      %p136 = por %p134, %p135
      %p137 = scmp.ne.s32.totalorder %s128, %s129
      %p138 = scmp.eq.s32.totalorder %s24, 0
      %p139 = por %p137, %p138
      %p140 = scmp.ne.s32.totalorder %s128, %s129
      %p141 = scmp.eq.s32.totalorder %s25, 1
      %p142 = por %p140, %p141
      %p144 = scmp.ne.s32.totalorder %s129, %s143
      %p145 = scmp.eq.s32.totalorder %s25, 0
      %p146 = por %p144, %p145
      %s148 = sadd.s32 %s147, 1
      %p151 = scmp.eq.s32.totalorder %s19, 1
      %p152 = scmp.ne.s32.totalorder %s147, %s149
      %p153 = scmp.eq.s32.totalorder %s19, 0
      %p154 = por %p152, %p153
      %p155 = scmp.ne.s32.totalorder %s147, %s149
      %p156 = scmp.eq.s32.totalorder %s24, 1
      %p157 = por %p155, %p156
      %p158 = scmp.ne.s32.totalorder %s149, %s150
      %p159 = scmp.eq.s32.totalorder %s24, 0
      %p160 = por %p158, %p159
      %p161 = scmp.ne.s32.totalorder %s149, %s150
      %p162 = scmp.eq.s32.totalorder %s25, 1
      %p163 = por %p161, %p162
      %p165 = scmp.ne.s32.totalorder %s150, %s164
      %p166 = scmp.eq.s32.totalorder %s25, 0
      %p167 = por %p165, %p166
      %s169 = sadd.s32 %s168, 1
      %p172 = scmp.eq.s32.totalorder %s19, 1
      %p173 = scmp.ne.s32.totalorder %s168, %s170
      %p174 = scmp.eq.s32.totalorder %s19, 0
      %p175 = por %p173, %p174
      %p176 = scmp.ne.s32.totalorder %s168, %s170
      %p177 = scmp.eq.s32.totalorder %s24, 1
      %p178 = por %p176, %p177
      %p179 = scmp.ne.s32.totalorder %s170, %s171
      %p180 = scmp.eq.s32.totalorder %s24, 0
      %p181 = por %p179, %p180
      %p182 = scmp.ne.s32.totalorder %s170, %s171
      %p183 = scmp.eq.s32.totalorder %s25, 1
      %p184 = por %p182, %p183
      %p186 = scmp.ne.s32.totalorder %s171, %s185
      %p187 = scmp.eq.s32.totalorder %s25, 0
      %p188 = por %p186, %p187
      %s189 = ssub.s32 %s19, %s26
      %p190 = scmp.eq.s32.totalorder %s189, 0
      %s192 = sadd.s32 %s191, 1
      %s193 = scalar_select %p190, %s191, %s192
      %p196 = pneg %p190
      %p197 = scmp.eq.s32.totalorder %s19, 1
      %p198 = por %p196, %p197
      %p199 = scmp.ne.s32.totalorder %s191, %s194
      %p200 = scmp.eq.s32.totalorder %s19, 0
      %p201 = por %p199, %p200
      %p202 = scmp.ne.s32.totalorder %s191, %s194
      %p203 = scmp.eq.s32.totalorder %s24, 1
      %p204 = por %p202, %p203
      %p205 = scmp.ne.s32.totalorder %s194, %s195
      %p206 = scmp.eq.s32.totalorder %s24, 0
      %p207 = por %p205, %p206
      %p208 = scmp.ne.s32.totalorder %s194, %s195
      %p209 = scmp.eq.s32.totalorder %s25, 1
      %p210 = por %p208, %p209
      %p212 = scmp.ne.s32.totalorder %s195, %s211
      %p213 = scmp.eq.s32.totalorder %s25, 0
      %p214 = por %p212, %p213
      %p215 = scmp.le.s32.totalorder 1, %s19
      %p216 = scmp.lt.s32.totalorder %s19, 3
      %p217 = pnand %p215, %p216
      %p218 = pneg %p217
      // Predicated region
      $region9: #{tpu_custom_call.1} parent=5 // pred_check
        _
      $region10: #{tpu_custom_call.1} parent=5 // pred_check_branch
        %220 = sbr.rel (%p217) target = $region12
      $region11: #{tpu_custom_call.1} parent=5 // pred_region
        %s221 = ssub.s32 %s19, 1
        // Predicated region
        $region13: #{tpu_custom_call.1} parent=11 // pred_check
          %p222 = pneg %p118
        $region14: #{tpu_custom_call.1} parent=11 // pred_check_branch
          %224 = sbr.rel (%p222) target = $region16
        $region15: #{tpu_custom_call.1} parent=11 // pred_region
          _
        $region16: #{tpu_custom_call.1} parent=11 // pred_fallthru
          _
        // Predicated region
        $region17: #{tpu_custom_call.1} parent=11 // pred_check
          %p225 = pneg %p139
        $region18: #{tpu_custom_call.1} parent=11 // pred_check_branch
          %227 = sbr.rel (%p225) target = $region20
        $region19: #{tpu_custom_call.1} parent=11 // pred_region
          _
        $region20: #{tpu_custom_call.1} parent=11 // pred_fallthru
          _
        // Predicated region
        $region21: #{tpu_custom_call.1} parent=11 // pred_check
          %p228 = pneg %p160
        $region22: #{tpu_custom_call.1} parent=11 // pred_check_branch
          %230 = sbr.rel (%p228) target = $region24
        $region23: #{tpu_custom_call.1} parent=11 // pred_region
          _
        $region24: #{tpu_custom_call.1} parent=11 // pred_fallthru
          _
        // Predicated region
        $region25: #{tpu_custom_call.1} parent=11 // pred_check
          %p231 = pneg %p181
        $region26: #{tpu_custom_call.1} parent=11 // pred_check_branch
          %233 = sbr.rel (%p231) target = $region28
        $region27: #{tpu_custom_call.1} parent=11 // pred_region
          _
        $region28: #{tpu_custom_call.1} parent=11 // pred_fallthru
          _
      $region12: #{tpu_custom_call.1} parent=5 // pred_fallthru
        _
      %p234 = scmp.lt.s32.totalorder %s19, 2
      // Predicated region
      $region29: #{tpu_custom_call.1} parent=5 // pred_check
        %p235 = pneg %p234
      $region30: #{tpu_custom_call.1} parent=5 // pred_check_branch
        %237 = sbr.rel (%p235) target = $region32
      $region31: #{tpu_custom_call.1} parent=5 // pred_region
        // Predicated region
        $region33: #{tpu_custom_call.1} parent=31 // pred_check
          %p238 = pneg %p39
        $region34: #{tpu_custom_call.1} parent=31 // pred_check_branch
          %240 = sbr.rel (%p238) target = $region36
        $region35: #{tpu_custom_call.1} parent=31 // pred_region
          %p241 = scmp.lt.s32.totalorder %s19, 1
          %s242 = scalar_select %p241, %s19, 1
          %s243 = smul.addr %s242, 4
          %s244 = scalar_lea.vmem %s0, %s243
        $region36: #{tpu_custom_call.1} parent=31 // pred_fallthru
          _
        // Predicated region
        $region37: #{tpu_custom_call.1} parent=31 // pred_check
          %p245 = pneg %p65
        $region38: #{tpu_custom_call.1} parent=31 // pred_check_branch
          %247 = sbr.rel (%p245) target = $region40
        $region39: #{tpu_custom_call.1} parent=31 // pred_region
          %p248 = scmp.lt.s32.totalorder %s19, 1
          %s249 = scalar_select %p248, %s19, 1
          %s250 = smul.addr %s249, 8
          %s251 = smul.addr %s250, 4
          %s252 = scalar_lea.vmem %s1, %s251
        $region40: #{tpu_custom_call.1} parent=31 // pred_fallthru
          _
        // Predicated region
        $region41: #{tpu_custom_call.1} parent=31 // pred_check
          %p253 = pneg %p91
        $region42: #{tpu_custom_call.1} parent=31 // pred_check_branch
          %255 = sbr.rel (%p253) target = $region44
        $region43: #{tpu_custom_call.1} parent=31 // pred_region
          %s256 = sand.u32 %s81, 1
          %s257 = scalar_lea.sflag [#allocation4], %s256
          %s258 = sand.u32 %s81, 1
          %s259 = smul.addr %s258, 4
          %s260 = scalar_lea.vmem [#allocation3], %s259
          %s262 = ssub.s32 64, 64
          %263 = vsyncadd %s257, %s262
          %s264 = smul.addr %s19, 64
          %s265 = scalar_lea.hbm %s2, %s264
          %s267 = sshll.u32 %s260, 4
          %s268 = int_to_ptr.vmem [resolvable:$true] %s267
          %270 = dma.hbm_to_vmem [thread:$0]  %s265, 64, %s268, %s257
        $region44: #{tpu_custom_call.1} parent=31 // pred_fallthru
          _
      $region32: #{tpu_custom_call.1} parent=5 // pred_fallthru
        _
      %p271 = scmp.le.s32.totalorder 1, %s19
      %p272 = scmp.lt.s32.totalorder %s19, 3
      %p273 = pnand %p271, %p272
      %p274 = pneg %p273
      // Predicated region
      $region45: #{tpu_custom_call.1} parent=5 // pred_check
        _
      $region46: #{tpu_custom_call.1} parent=5 // pred_check_branch
        %276 = sbr.rel (%p273) target = $region48
      $region47: #{tpu_custom_call.1} parent=5 // pred_region
        %s277 = ssub.s32 %s19, 1
        %s278 = sand.u32 %s84, 1
        %s279 = scalar_lea.sflag [#allocation4], %s278
        %s280 = sand.u32 %s84, 1
        %s281 = smul.addr %s280, 4
        %s282 = scalar_lea.vmem [#allocation3], %s281
        // Predicated region
        $region49: #{tpu_custom_call.1} parent=47 // pred_check
          %p283 = pneg %p97
        $region50: #{tpu_custom_call.1} parent=47 // pred_check_branch
          %285 = sbr.rel (%p283) target = $region52
        $region51: #{tpu_custom_call.1} parent=47 // pred_region
          %286 = dma.done %s279, 64
        $region52: #{tpu_custom_call.1} parent=47 // pred_fallthru
          _
        %p287 = scmp.lt.s32.totalorder %s24, 1
        %s288 = scalar_select %p287, %s24, 1
        %s289 = smul.addr %s288, 4
        %s290 = scalar_lea.vmem %s0, %s289
        %p291 = pneg %p45
        %p292 = pneg %p42
        %p293 = scmp.lt.s32.totalorder %s24, 1
        %s294 = scalar_select %p293, %s24, 1
        %s295 = smul.addr %s294, 8
        %s296 = smul.addr %s295, 4
        %s297 = scalar_lea.vmem %s1, %s296
        %p298 = pneg %p71
        %p299 = pneg %p68
        %s300 = sand.u32 %s84, 1
        %s301 = scalar_lea.sflag [#allocation4], %s300
        %s302 = sand.u32 %s84, 1
        %s303 = smul.addr %s302, 4
        %s304 = scalar_lea.vmem [#allocation3], %s303
        %p305 = pneg %p97
        %p306 = pneg %p94
        %p307 = pneg %p118
        %p308 = pneg %p115
        %p309 = pneg %p139
        %p310 = pneg %p136
        %p311 = pneg %p160
        %p312 = pneg %p157
        %p313 = pneg %p181
        %p314 = pneg %p178
        %p315 = pneg %p207
        %p316 = pneg %p204
        %s317 = sand.u32 %s194, 1
        %s318 = scalar_lea.sflag [#allocation5], %s317
        %s319 = sand.u32 %s194, 1
        %s320 = smul.addr %s319, 8
        %s321 = scalar_lea.vmem [#allocation6], %s320
        %p322 = scmp.lt.s32.totalorder %s24, 1
        %s323 = scalar_select %p322, %s24, 1
        %s324 = smul.addr %s323, 4
        %s325 = scalar_lea.vmem %s0, %s324
        %p326 = scmp.lt.s32.totalorder %s24, 1
        %s327 = scalar_select %p326, %s24, 1
        %s328 = smul.addr %s327, 8
        %s329 = smul.addr %s328, 4
        %s330 = scalar_lea.vmem %s1, %s329
        %v332 = vld [vmem:[%s325] sm:$0xf]
        %v333 = vld [vmem:[%s282] sm:$0xf]
        %v334 = vld [vmem:[%s330] sm:$0xf]
        %v335 = vld [vmem:[%s330 + $0x4] sm:$0xf]
        %v336 = vld [vmem:[%s330 + $0x8] sm:$0xf]
        %v337 = vld [vmem:[%s330 + $0xc] sm:$0xf]
        %v338 = vld [vmem:[%s330 + $0x10] sm:$0xf]
        %v339 = vld [vmem:[%s330 + $0x14] sm:$0xf]
        %v340 = vld [vmem:[%s330 + $0x18] sm:$0xf]
        %v341 = vld [vmem:[%s330 + $0x1c] sm:$0xf]
        %v342 = vunpack.c.l.bf16 %v334
        %v343 = vunpack.c.l.bf16 %v335
        %v344 = vunpack.c.l.bf16 %v336
        %v345 = vunpack.c.l.bf16 %v337
        %v346 = vunpack.c.l.bf16 %v338
        %v347 = vunpack.c.l.bf16 %v339
        %v348 = vunpack.c.l.bf16 %v340
        %v349 = vunpack.c.l.bf16 %v341
        %vm350 = vcmask 261120
        %v351 = vsel %vm350, %v342, 0.0
        %v352 = vrot.slane %v351, 4
        %v353 = vadd.f32 %v351, %v352
        %v354 = vrot.slane %v353, 2
        %v355 = vadd.f32 %v353, %v354
        %v356 = vrot.slane %v355, 1
        %v357 = vadd.f32 %v355, %v356
        %v358 = vsel %vm350, %v343, 0.0
        %v359 = vrot.slane %v358, 4
        %v360 = vadd.f32 %v358, %v359
        %v361 = vrot.slane %v360, 2
        %v362 = vadd.f32 %v360, %v361
        %v363 = vrot.slane %v362, 1
        %v364 = vadd.f32 %v362, %v363
        %v365 = vsel %vm350, %v344, 0.0
        %v366 = vrot.slane %v365, 4
        %v367 = vadd.f32 %v365, %v366
        %v368 = vrot.slane %v367, 2
        %v369 = vadd.f32 %v367, %v368
        %v370 = vrot.slane %v369, 1
        %v371 = vadd.f32 %v369, %v370
        %v372 = vsel %vm350, %v345, 0.0
        %v373 = vrot.slane %v372, 4
        %v374 = vadd.f32 %v372, %v373
        %v375 = vrot.slane %v374, 2
        %v376 = vadd.f32 %v374, %v375
        %v377 = vrot.slane %v376, 1
        %v378 = vadd.f32 %v376, %v377
        %v379 = vsel %vm350, %v346, 0.0
        %v380 = vrot.slane %v379, 4
        %v381 = vadd.f32 %v379, %v380
        %v382 = vrot.slane %v381, 2
        %v383 = vadd.f32 %v381, %v382
        %v384 = vrot.slane %v383, 1
        %v385 = vadd.f32 %v383, %v384
        %v386 = vsel %vm350, %v347, 0.0
        %v387 = vrot.slane %v386, 4
        %v388 = vadd.f32 %v386, %v387
        %v389 = vrot.slane %v388, 2
        %v390 = vadd.f32 %v388, %v389
        %v391 = vrot.slane %v390, 1
        %v392 = vadd.f32 %v390, %v391
        %v393 = vsel %vm350, %v348, 0.0
        %v394 = vrot.slane %v393, 4
        %v395 = vadd.f32 %v393, %v394
        %v396 = vrot.slane %v395, 2
        %v397 = vadd.f32 %v395, %v396
        %v398 = vrot.slane %v397, 1
        %v399 = vadd.f32 %v397, %v398
        %v400 = vsel %vm350, %v349, 0.0
        %v401 = vrot.slane %v400, 4
        %v402 = vadd.f32 %v400, %v401
        %v403 = vrot.slane %v402, 2
        %v404 = vadd.f32 %v402, %v403
        %v405 = vrot.slane %v404, 1
        %v406 = vadd.f32 %v404, %v405
        %v407 = vrcp.pop 8.0
        %v408 = vmul.f32 %v357, %v407
        %v409 = vmul.f32 %v364, %v407
        %v410 = vmul.f32 %v371, %v407
        %v411 = vmul.f32 %v378, %v407
        %v412 = vmul.f32 %v385, %v407
        %v413 = vmul.f32 %v392, %v407
        %v414 = vmul.f32 %v399, %v407
        %v415 = vmul.f32 %v406, %v407
        %v416 = vpack.c.bf16 %v408, %v408
        %v417 = vpack.c.bf16 %v409, %v409
        %v418 = vpack.c.bf16 %v410, %v410
        %v419 = vpack.c.bf16 %v411, %v411
        %v420 = vpack.c.bf16 %v412, %v412
        %v421 = vpack.c.bf16 %v413, %v413
        %v422 = vpack.c.bf16 %v414, %v414
        %v423 = vpack.c.bf16 %v415, %v415
        %vm424 = vcmask 64512
        %v426 = vsel %vm424, %v333, 0
        %vm428 = vcmask 1043456
        %v430 = vsel %vm428, %v332, 0
        %432 = vmatprep.subr.bf16.mxu0 0
        %433 = vmatpush1.bf16.msra.mxu0 %v430
        %434 = vmatprep.subr.bf16.mxu0 0
        %435 = vmatpush1.bf16.msra.mxu0 0
        %436 = vmatprep.subr.bf16.mxu0 0
        %437 = vmatpush1.bf16.msra.mxu0 0
        %438 = vmatprep.subr.bf16.mxu0 0
        %439 = vmatpush1.bf16.msra.mxu0 0
        %440 = vmatprep.subr.bf16.mxu0 0
        %441 = vmatpush1.bf16.msra.mxu0 0
        %442 = vmatprep.subr.bf16.mxu0 0
        %443 = vmatpush1.bf16.msra.mxu0 0
        %444 = vmatprep.subr.bf16.mxu0 0
        %445 = vmatpush1.bf16.msra.mxu0 0
        %446 = vmatprep.subr.bf16.mxu0 0
        %447 = vmatpush1.bf16.msra.mxu0 0
        %448 = vmatprep.subr.bf16.mxu0 0
        %449 = vmatpush1.bf16.msra.mxu0 0
        %450 = vmatprep.subr.bf16.mxu0 0
        %451 = vmatpush1.bf16.msra.mxu0 0
        %452 = vmatprep.subr.bf16.mxu0 0
        %453 = vmatpush1.bf16.msra.mxu0 0
        %454 = vmatprep.subr.bf16.mxu0 0
        %455 = vmatpush1.bf16.msra.mxu0 0
        %456 = vmatprep.subr.bf16.mxu0 0
        %457 = vmatpush1.bf16.msra.mxu0 0
        %458 = vmatprep.subr.bf16.mxu0 0
        %459 = vmatpush1.bf16.msra.mxu0 0
        %460 = vmatprep.subr.bf16.mxu0 0
        %461 = vmatpush1.bf16.msra.mxu0 0
        %462 = vmatprep.subr.bf16.mxu0 0
        %463 = vmatpush1.bf16.msra.mxu0 0
        %464 = vmatprep.mubr.bf16.mxu0 0
        %465 = vmatmul.mubr.bf16.gmra.mrb[0].mxu0 %v426
        %v466 = vpop.f32.mrb[0].mxu0
        %v467 = vadd.f32 0.0, %v466
        %v468 = vpop.f32.mrb[0].mxu0
        %v469 = vpop.f32.mrb[0].mxu0
        %v470 = vpop.f32.mrb[0].mxu0
        %471 = vdwg.mxu0
        %v472 = vpack.c.bf16 %v467, %v467
        %v473 = vunpack.c.l.bf16 %v333
        %v474 = vsel %vm424, %v473, 0.0
        %475 = vadd.xlane.f32.xlu0 %v474
        %v476 = vpop.xlane.xlu0 %475
        %vm477 = vcmp.eq.f32.partialorder %v476, 0.0
        %v478 = vsel %vm477, 1, 0
        %v479 = vcvt.s32.f32 %v478
        %v480 = vadd.f32 %v476, %v479
        %v481 = vrcp.pop %v480
        %v482 = vmul.f32 1.0, %v481
        %v483 = vld [vmem:[%s5] sm:$0xf]
        %v484 = vld [vmem:[%s5 + $0x4] sm:$0xf]
        %v485 = vld [vmem:[%s5 + $0x8] sm:$0xf]
        %v486 = vld [vmem:[%s5 + $0xc] sm:$0xf]
        %v487 = vld [vmem:[%s6] sm:$0x1]
        %v489 = vlaneseq
        %v490 = vshrl.u32 %v489, 7
        %v491 = vsub.s32 0, %v490
        %v492 = vrot.slane %v487, %v491
        %v498 = vunpack.c.l.b16 %v483
        %v499 = vunpack.c.l.b16 %v484
        %v500 = vunpack.c.l.b16 %v485
        %v501 = vunpack.c.l.b16 %v486
        %v502 = vpack.c.b16 %v499, %v498
        %v503 = vpack.c.b16 %v501, %v500
        %v506 = vsel %vm350, %v332, 0
        %508 = vmatprep.subr.bf16.mxu0 0
        %509 = vmatpush1.bf16.msra.mxu0 %v502
        %510 = vmatprep.subr.bf16.mxu0 0
        %511 = vmatpush1.bf16.msra.mxu0 %v503
        %512 = vmatprep.subr.bf16.mxu0 0
        %513 = vmatpush1.bf16.msra.mxu0 0
        %514 = vmatprep.subr.bf16.mxu0 0
        %515 = vmatpush1.bf16.msra.mxu0 0
        %516 = vmatprep.subr.bf16.mxu0 0
        %517 = vmatpush1.bf16.msra.mxu0 0
        %518 = vmatprep.subr.bf16.mxu0 0
        %519 = vmatpush1.bf16.msra.mxu0 0
        %520 = vmatprep.subr.bf16.mxu0 0
        %521 = vmatpush1.bf16.msra.mxu0 0
        %522 = vmatprep.subr.bf16.mxu0 0
        %523 = vmatpush1.bf16.msra.mxu0 0
        %524 = vmatprep.subr.bf16.mxu0 0
        %525 = vmatpush1.bf16.msra.mxu0 0
        %526 = vmatprep.subr.bf16.mxu0 0
        %527 = vmatpush1.bf16.msra.mxu0 0
        %528 = vmatprep.subr.bf16.mxu0 0
        %529 = vmatpush1.bf16.msra.mxu0 0
        %530 = vmatprep.subr.bf16.mxu0 0
        %531 = vmatpush1.bf16.msra.mxu0 0
        %532 = vmatprep.subr.bf16.mxu0 0
        %533 = vmatpush1.bf16.msra.mxu0 0
        %534 = vmatprep.subr.bf16.mxu0 0
        %535 = vmatpush1.bf16.msra.mxu0 0
        %536 = vmatprep.subr.bf16.mxu0 0
        %537 = vmatpush1.bf16.msra.mxu0 0
        %538 = vmatprep.subr.bf16.mxu0 0
        %539 = vmatpush1.bf16.msra.mxu0 0
        %540 = vmatprep.mubr.bf16.mxu0 0
        %541 = vmatmul.mubr.bf16.gmra.mrb[0].mxu0 %v506
        %v542 = vpop.f32.mrb[0].mxu0
        %v543 = vadd.f32 %v492, %v542
        %v544 = vpop.f32.mrb[0].mxu0
        %v545 = vpop.f32.mrb[0].mxu0
        %v546 = vpop.f32.mrb[0].mxu0
        %547 = vdwg.mxu0
        %v548 = vld [vmem:[%s3] sm:$0xf]
        %v549 = vld [vmem:[%s3 + $0x4] sm:$0xf]
        %v550 = vld [vmem:[%s3 + $0x8] sm:$0xf]
        %v551 = vld [vmem:[%s3 + $0xc] sm:$0xf]
        %v552 = vld [vmem:[%s3 + $0x10] sm:$0xf]
        %v553 = vld [vmem:[%s3 + $0x14] sm:$0xf]
        %v554 = vld [vmem:[%s3 + $0x18] sm:$0xf]
        %v555 = vld [vmem:[%s3 + $0x1c] sm:$0xf]
        %v560 = vunpack.c.l.b16 %v552
        %v561 = vunpack.c.l.b16 %v553
        %v562 = vunpack.c.l.b16 %v554
        %v563 = vunpack.c.l.b16 %v555
        %v564 = vpack.c.b16 %v561, %v560
        %v565 = vpack.c.b16 %v563, %v562
        %v569 = vsel %vm350, %v472, 0
        %571 = vmatprep.subr.bf16.mxu0 0
        %572 = vmatpush1.bf16.msra.mxu0 %v564
        %573 = vmatprep.subr.bf16.mxu0 0
        %574 = vmatpush1.bf16.msra.mxu0 %v565
        %575 = vmatprep.subr.bf16.mxu0 0
        %576 = vmatpush1.bf16.msra.mxu0 0
        %577 = vmatprep.subr.bf16.mxu0 0
        %578 = vmatpush1.bf16.msra.mxu0 0
        %579 = vmatprep.subr.bf16.mxu0 0
        %580 = vmatpush1.bf16.msra.mxu0 0
        %581 = vmatprep.subr.bf16.mxu0 0
        %582 = vmatpush1.bf16.msra.mxu0 0
        %583 = vmatprep.subr.bf16.mxu0 0
        %584 = vmatpush1.bf16.msra.mxu0 0
        %585 = vmatprep.subr.bf16.mxu0 0
        %586 = vmatpush1.bf16.msra.mxu0 0
        %587 = vmatprep.subr.bf16.mxu0 0
        %588 = vmatpush1.bf16.msra.mxu0 0
        %589 = vmatprep.subr.bf16.mxu0 0
        %590 = vmatpush1.bf16.msra.mxu0 0
        %591 = vmatprep.subr.bf16.mxu0 0
        %592 = vmatpush1.bf16.msra.mxu0 0
        %593 = vmatprep.subr.bf16.mxu0 0
        %594 = vmatpush1.bf16.msra.mxu0 0
        %595 = vmatprep.subr.bf16.mxu0 0
        %596 = vmatpush1.bf16.msra.mxu0 0
        %597 = vmatprep.subr.bf16.mxu0 0
        %598 = vmatpush1.bf16.msra.mxu0 0
        %599 = vmatprep.subr.bf16.mxu0 0
        %600 = vmatpush1.bf16.msra.mxu0 0
        %601 = vmatprep.subr.bf16.mxu0 0
        %602 = vmatpush1.bf16.msra.mxu0 0
        %603 = vmatprep.mubr.bf16.mxu0 0
        %604 = vmatmul.mubr.bf16.gmra.mrb[0].mxu0 %v569
        %v605 = vpop.f32.mrb[0].mxu0
        %v606 = vadd.f32 0.0, %v605
        %v607 = vpop.f32.mrb[0].mxu0
        %v608 = vpop.f32.mrb[0].mxu0
        %v609 = vpop.f32.mrb[0].mxu0
        %610 = vdwg.mxu0
        %v619 = vunpack.c.l.b16 %v416
        %v620 = vunpack.c.l.b16 %v417
        %v621 = vunpack.c.l.b16 %v418
        %v622 = vunpack.c.l.b16 %v419
        %v623 = vunpack.c.l.b16 %v420
        %v624 = vunpack.c.l.b16 %v421
        %v625 = vunpack.c.l.b16 %v422
        %v626 = vunpack.c.l.b16 %v423
        %vm627 = vcmask 1041409
        %v628 = vsel %vm627, %v620, %v619
        %vm629 = vcmask 1042434
        %v630 = vsel %vm629, %v621, %v628
        %vm631 = vcmask 1043459
        %v632 = vsel %vm631, %v622, %v630
        %vm633 = vcmask 1044484
        %v634 = vsel %vm633, %v623, %v632
        %vm635 = vcmask 1045509
        %v636 = vsel %vm635, %v624, %v634
        %vm637 = vcmask 1046534
        %v638 = vsel %vm637, %v625, %v636
        %vm639 = vcmask 1047559
        %v640 = vsel %vm639, %v626, %v638
        %v641 = vpack.c.b16 %v640, %v640
        %v646 = vunpack.c.l.b16 %v548
        %v647 = vunpack.c.l.b16 %v549
        %v648 = vunpack.c.l.b16 %v550
        %v649 = vunpack.c.l.b16 %v551
        %v650 = vpack.c.b16 %v647, %v646
        %v651 = vpack.c.b16 %v649, %v648
        %v655 = vsel %vm350, %v641, 0
        %657 = vmatprep.subr.bf16.mxu0 0
        %658 = vmatpush1.bf16.msra.mxu0 %v650
        %659 = vmatprep.subr.bf16.mxu0 0
        %660 = vmatpush1.bf16.msra.mxu0 %v651
        %661 = vmatprep.subr.bf16.mxu0 0
        %662 = vmatpush1.bf16.msra.mxu0 0
        %663 = vmatprep.subr.bf16.mxu0 0
        %664 = vmatpush1.bf16.msra.mxu0 0
        %665 = vmatprep.subr.bf16.mxu0 0
        %666 = vmatpush1.bf16.msra.mxu0 0
        %667 = vmatprep.subr.bf16.mxu0 0
        %668 = vmatpush1.bf16.msra.mxu0 0
        %669 = vmatprep.subr.bf16.mxu0 0
        %670 = vmatpush1.bf16.msra.mxu0 0
        %671 = vmatprep.subr.bf16.mxu0 0
        %672 = vmatpush1.bf16.msra.mxu0 0
        %673 = vmatprep.subr.bf16.mxu0 0
        %674 = vmatpush1.bf16.msra.mxu0 0
        %675 = vmatprep.subr.bf16.mxu0 0
        %676 = vmatpush1.bf16.msra.mxu0 0
        %677 = vmatprep.subr.bf16.mxu0 0
        %678 = vmatpush1.bf16.msra.mxu0 0
        %679 = vmatprep.subr.bf16.mxu0 0
        %680 = vmatpush1.bf16.msra.mxu0 0
        %681 = vmatprep.subr.bf16.mxu0 0
        %682 = vmatpush1.bf16.msra.mxu0 0
        %683 = vmatprep.subr.bf16.mxu0 0
        %684 = vmatpush1.bf16.msra.mxu0 0
        %685 = vmatprep.subr.bf16.mxu0 0
        %686 = vmatpush1.bf16.msra.mxu0 0
        %687 = vmatprep.subr.bf16.mxu0 0
        %688 = vmatpush1.bf16.msra.mxu0 0
        %689 = vmatprep.mubr.bf16.mxu0 0
        %690 = vmatmul.mubr.bf16.gmra.mrb[0].mxu0 %v655
        %v691 = vpop.f32.mrb[0].mxu0
        %v692 = vadd.f32 %v606, %v691
        %v693 = vpop.f32.mrb[0].mxu0
        %v694 = vpop.f32.mrb[0].mxu0
        %v695 = vpop.f32.mrb[0].mxu0
        %696 = vdwg.mxu0
        %v697 = vmul.f32 %v692, %v482
        %v698 = vmax.f32 %v697, 0.0
        %v699 = vpack.c.bf16 %v698, %v698
        %v701 = vsel %vm428, %v699, 0
        %703 = vmatprep.subr.bf16.mxu0 0
        %704 = vmatpush1.bf16.msra.mxu0 %v701
        %705 = vmatprep.subr.bf16.mxu0 0
        %706 = vmatpush1.bf16.msra.mxu0 0
        %707 = vmatprep.subr.bf16.mxu0 0
        %708 = vmatpush1.bf16.msra.mxu0 0
        %709 = vmatprep.subr.bf16.mxu0 0
        %710 = vmatpush1.bf16.msra.mxu0 0
        %711 = vmatprep.subr.bf16.mxu0 0
        %712 = vmatpush1.bf16.msra.mxu0 0
        %713 = vmatprep.subr.bf16.mxu0 0
        %714 = vmatpush1.bf16.msra.mxu0 0
        %715 = vmatprep.subr.bf16.mxu0 0
        %716 = vmatpush1.bf16.msra.mxu0 0
        %717 = vmatprep.subr.bf16.mxu0 0
        %718 = vmatpush1.bf16.msra.mxu0 0
        %719 = vmatprep.subr.bf16.mxu0 0
        %720 = vmatpush1.bf16.msra.mxu0 0
        %721 = vmatprep.subr.bf16.mxu0 0
        %722 = vmatpush1.bf16.msra.mxu0 0
        %723 = vmatprep.subr.bf16.mxu0 0
        %724 = vmatpush1.bf16.msra.mxu0 0
        %725 = vmatprep.subr.bf16.mxu0 0
        %726 = vmatpush1.bf16.msra.mxu0 0
        %727 = vmatprep.subr.bf16.mxu0 0
        %728 = vmatpush1.bf16.msra.mxu0 0
        %729 = vmatprep.subr.bf16.mxu0 0
        %730 = vmatpush1.bf16.msra.mxu0 0
        %731 = vmatprep.subr.bf16.mxu0 0
        %732 = vmatpush1.bf16.msra.mxu0 0
        %733 = vmatprep.subr.bf16.mxu0 0
        %734 = vmatpush1.bf16.msra.mxu0 0
        %735 = vmatprep.mubr.bf16.mxu0 0
        %736 = vmatmul.mubr.bf16.gmra.mrb[0].mxu0 %v426
        %v737 = vpop.f32.mrb[0].mxu0
        %v738 = vadd.f32 0.0, %v737
        %v739 = vpop.f32.mrb[0].mxu0
        %v740 = vpop.f32.mrb[0].mxu0
        %v741 = vpop.f32.mrb[0].mxu0
        %742 = vdwg.mxu0
        %v743 = vpack.c.bf16 %v738, %v738
        %vm744 = vcmask 125952
        %745 = vst.msk [vmem:[#allocation2] sm:$0xf] %vm744, %v743
        %v746 = vld [vmem:[%s5] sm:$0xf]
        %v747 = vld [vmem:[%s5 + $0x4] sm:$0xf]
        %v750 = vunpack.c.l.b16 %v746
        %v751 = vunpack.c.l.b16 %v747
        %v752 = vpack.c.b16 %v751, %v750
        %vm754 = vcmask 130048
        %v755 = vsel %vm754, %v699, 0
        %757 = vmatprep.subr.bf16.mxu0 0
        %758 = vmatpush1.bf16.msra.mxu0 %v752
        %759 = vmatprep.subr.bf16.mxu0 0
        %760 = vmatpush1.bf16.msra.mxu0 0
        %761 = vmatprep.subr.bf16.mxu0 0
        %762 = vmatpush1.bf16.msra.mxu0 0
        %763 = vmatprep.subr.bf16.mxu0 0
        %764 = vmatpush1.bf16.msra.mxu0 0
        %765 = vmatprep.subr.bf16.mxu0 0
        %766 = vmatpush1.bf16.msra.mxu0 0
        %767 = vmatprep.subr.bf16.mxu0 0
        %768 = vmatpush1.bf16.msra.mxu0 0
        %769 = vmatprep.subr.bf16.mxu0 0
        %770 = vmatpush1.bf16.msra.mxu0 0
        %771 = vmatprep.subr.bf16.mxu0 0
        %772 = vmatpush1.bf16.msra.mxu0 0
        %773 = vmatprep.subr.bf16.mxu0 0
        %774 = vmatpush1.bf16.msra.mxu0 0
        %775 = vmatprep.subr.bf16.mxu0 0
        %776 = vmatpush1.bf16.msra.mxu0 0
        %777 = vmatprep.subr.bf16.mxu0 0
        %778 = vmatpush1.bf16.msra.mxu0 0
        %779 = vmatprep.subr.bf16.mxu0 0
        %780 = vmatpush1.bf16.msra.mxu0 0
        %781 = vmatprep.subr.bf16.mxu0 0
        %782 = vmatpush1.bf16.msra.mxu0 0
        %783 = vmatprep.subr.bf16.mxu0 0
        %784 = vmatpush1.bf16.msra.mxu0 0
        %785 = vmatprep.subr.bf16.mxu0 0
        %786 = vmatpush1.bf16.msra.mxu0 0
        %787 = vmatprep.subr.bf16.mxu0 0
        %788 = vmatpush1.bf16.msra.mxu0 0
        %789 = vmatprep.mubr.bf16.mxu0 0
        %790 = vmatmul.mubr.bf16.gmra.mrb[0].mxu0 %v755
        %v791 = vpop.f32.mrb[0].mxu0
        %v792 = vadd.f32 0.0, %v791
        %v793 = vpop.f32.mrb[0].mxu0
        %v794 = vpop.f32.mrb[0].mxu0
        %v795 = vpop.f32.mrb[0].mxu0
        %796 = vdwg.mxu0
        %v797 = vadd.f32 %v543, %v792
        %v798 = vld [vmem:[%s4] sm:$0xf]
        %v799 = vld [vmem:[%s4 + $0x4] sm:$0xf]
        %v800 = vld [vmem:[%s4 + $0x8] sm:$0xf]
        %v801 = vld [vmem:[%s4 + $0xc] sm:$0xf]
        %v802 = vld [vmem:[%s4 + $0x10] sm:$0xf]
        %v803 = vld [vmem:[%s4 + $0x14] sm:$0xf]
        %v804 = vld [vmem:[%s4 + $0x18] sm:$0xf]
        %v805 = vld [vmem:[%s4 + $0x1c] sm:$0xf]
        %v810 = vunpack.c.l.b16 %v802
        %v811 = vunpack.c.l.b16 %v803
        %v812 = vunpack.c.l.b16 %v804
        %v813 = vunpack.c.l.b16 %v805
        %v814 = vpack.c.b16 %v811, %v810
        %v815 = vpack.c.b16 %v813, %v812
        %818 = vmatprep.subr.bf16.mxu0 0
        %819 = vmatpush1.bf16.msra.mxu0 %v814
        %820 = vmatprep.subr.bf16.mxu0 0
        %821 = vmatpush1.bf16.msra.mxu0 %v815
        %822 = vmatprep.subr.bf16.mxu0 0
        %823 = vmatpush1.bf16.msra.mxu0 0
        %824 = vmatprep.subr.bf16.mxu0 0
        %825 = vmatpush1.bf16.msra.mxu0 0
        %826 = vmatprep.subr.bf16.mxu0 0
        %827 = vmatpush1.bf16.msra.mxu0 0
        %828 = vmatprep.subr.bf16.mxu0 0
        %829 = vmatpush1.bf16.msra.mxu0 0
        %830 = vmatprep.subr.bf16.mxu0 0
        %831 = vmatpush1.bf16.msra.mxu0 0
        %832 = vmatprep.subr.bf16.mxu0 0
        %833 = vmatpush1.bf16.msra.mxu0 0
        %834 = vmatprep.subr.bf16.mxu0 0
        %835 = vmatpush1.bf16.msra.mxu0 0
        %836 = vmatprep.subr.bf16.mxu0 0
        %837 = vmatpush1.bf16.msra.mxu0 0
        %838 = vmatprep.subr.bf16.mxu0 0
        %839 = vmatpush1.bf16.msra.mxu0 0
        %840 = vmatprep.subr.bf16.mxu0 0
        %841 = vmatpush1.bf16.msra.mxu0 0
        %842 = vmatprep.subr.bf16.mxu0 0
        %843 = vmatpush1.bf16.msra.mxu0 0
        %844 = vmatprep.subr.bf16.mxu0 0
        %845 = vmatpush1.bf16.msra.mxu0 0
        %846 = vmatprep.subr.bf16.mxu0 0
        %847 = vmatpush1.bf16.msra.mxu0 0
        %848 = vmatprep.subr.bf16.mxu0 0
        %849 = vmatpush1.bf16.msra.mxu0 0
        %850 = vmatprep.mubr.bf16.mxu0 0
        %851 = vmatmul.mubr.bf16.gmra.mrb[0].mxu0 %v569
        %v852 = vpop.f32.mrb[0].mxu0
        %v853 = vadd.f32 0.0, %v852
        %v854 = vpop.f32.mrb[0].mxu0
        %v855 = vpop.f32.mrb[0].mxu0
        %v856 = vpop.f32.mrb[0].mxu0
        %857 = vdwg.mxu0
        %v862 = vunpack.c.l.b16 %v798
        %v863 = vunpack.c.l.b16 %v799
        %v864 = vunpack.c.l.b16 %v800
        %v865 = vunpack.c.l.b16 %v801
        %v866 = vpack.c.b16 %v863, %v862
        %v867 = vpack.c.b16 %v865, %v864
        %870 = vmatprep.subr.bf16.mxu0 0
        %871 = vmatpush1.bf16.msra.mxu0 %v866
        %872 = vmatprep.subr.bf16.mxu0 0
        %873 = vmatpush1.bf16.msra.mxu0 %v867
        %874 = vmatprep.subr.bf16.mxu0 0
        %875 = vmatpush1.bf16.msra.mxu0 0
        %876 = vmatprep.subr.bf16.mxu0 0
        %877 = vmatpush1.bf16.msra.mxu0 0
        %878 = vmatprep.subr.bf16.mxu0 0
        %879 = vmatpush1.bf16.msra.mxu0 0
        %880 = vmatprep.subr.bf16.mxu0 0
        %881 = vmatpush1.bf16.msra.mxu0 0
        %882 = vmatprep.subr.bf16.mxu0 0
        %883 = vmatpush1.bf16.msra.mxu0 0
        %884 = vmatprep.subr.bf16.mxu0 0
        %885 = vmatpush1.bf16.msra.mxu0 0
        %886 = vmatprep.subr.bf16.mxu0 0
        %887 = vmatpush1.bf16.msra.mxu0 0
        %888 = vmatprep.subr.bf16.mxu0 0
        %889 = vmatpush1.bf16.msra.mxu0 0
        %890 = vmatprep.subr.bf16.mxu0 0
        %891 = vmatpush1.bf16.msra.mxu0 0
        %892 = vmatprep.subr.bf16.mxu0 0
        %893 = vmatpush1.bf16.msra.mxu0 0
        %894 = vmatprep.subr.bf16.mxu0 0
        %895 = vmatpush1.bf16.msra.mxu0 0
        %896 = vmatprep.subr.bf16.mxu0 0
        %897 = vmatpush1.bf16.msra.mxu0 0
        %898 = vmatprep.subr.bf16.mxu0 0
        %899 = vmatpush1.bf16.msra.mxu0 0
        %900 = vmatprep.subr.bf16.mxu0 0
        %901 = vmatpush1.bf16.msra.mxu0 0
        %902 = vmatprep.mubr.bf16.mxu0 0
        %903 = vmatmul.mubr.bf16.gmra.mrb[0].mxu0 %v655
        %v904 = vpop.f32.mrb[0].mxu0
        %v905 = vadd.f32 %v853, %v904
        %v906 = vpop.f32.mrb[0].mxu0
        %v907 = vpop.f32.mrb[0].mxu0
        %v908 = vpop.f32.mrb[0].mxu0
        %909 = vdwg.mxu0
        %v910 = vld [vmem:[%s4 + $0x20] sm:$0xf]
        %v911 = vld [vmem:[%s4 + $0x24] sm:$0xf]
        %v912 = vld [vmem:[#allocation2] sm:$0xf]
        %v915 = vunpack.c.l.b16 %v910
        %v916 = vunpack.c.l.b16 %v911
        %v917 = vpack.c.b16 %v916, %v915
        %v920 = vsel %vm754, %v912, 0
        %922 = vmatprep.subr.bf16.mxu0 0
        %923 = vmatpush1.bf16.msra.mxu0 %v917
        %924 = vmatprep.subr.bf16.mxu0 0
        %925 = vmatpush1.bf16.msra.mxu0 0
        %926 = vmatprep.subr.bf16.mxu0 0
        %927 = vmatpush1.bf16.msra.mxu0 0
        %928 = vmatprep.subr.bf16.mxu0 0
        %929 = vmatpush1.bf16.msra.mxu0 0
        %930 = vmatprep.subr.bf16.mxu0 0
        %931 = vmatpush1.bf16.msra.mxu0 0
        %932 = vmatprep.subr.bf16.mxu0 0
        %933 = vmatpush1.bf16.msra.mxu0 0
        %934 = vmatprep.subr.bf16.mxu0 0
        %935 = vmatpush1.bf16.msra.mxu0 0
        %936 = vmatprep.subr.bf16.mxu0 0
        %937 = vmatpush1.bf16.msra.mxu0 0
        %938 = vmatprep.subr.bf16.mxu0 0
        %939 = vmatpush1.bf16.msra.mxu0 0
        %940 = vmatprep.subr.bf16.mxu0 0
        %941 = vmatpush1.bf16.msra.mxu0 0
        %942 = vmatprep.subr.bf16.mxu0 0
        %943 = vmatpush1.bf16.msra.mxu0 0
        %944 = vmatprep.subr.bf16.mxu0 0
        %945 = vmatpush1.bf16.msra.mxu0 0
        %946 = vmatprep.subr.bf16.mxu0 0
        %947 = vmatpush1.bf16.msra.mxu0 0
        %948 = vmatprep.subr.bf16.mxu0 0
        %949 = vmatpush1.bf16.msra.mxu0 0
        %950 = vmatprep.subr.bf16.mxu0 0
        %951 = vmatpush1.bf16.msra.mxu0 0
        %952 = vmatprep.subr.bf16.mxu0 0
        %953 = vmatpush1.bf16.msra.mxu0 0
        %954 = vmatprep.mubr.bf16.mxu0 0
        %955 = vmatmul.mubr.bf16.gmra.mrb[0].mxu0 %v920
        %v956 = vpop.f32.mrb[0].mxu0
        %v957 = vadd.f32 0.0, %v956
        %v958 = vpop.f32.mrb[0].mxu0
        %v959 = vpop.f32.mrb[0].mxu0
        %v960 = vpop.f32.mrb[0].mxu0
        %961 = vdwg.mxu0
        %v962 = vadd.f32 %v905, %v957
        %v963 = vmul.f32 %v962, %v482
        %v964 = vmax.f32 %v963, 0.0
        %v965 = vpack.c.bf16 %v964, %v964
        %v966 = vld [vmem:[%s5 + $0x8] sm:$0xf]
        %v967 = vld [vmem:[%s5 + $0xc] sm:$0xf]
        %v970 = vunpack.c.l.b16 %v966
        %v971 = vunpack.c.l.b16 %v967
        %v972 = vpack.c.b16 %v971, %v970
        %v975 = vsel %vm754, %v965, 0
        %977 = vmatprep.subr.bf16.mxu0 0
        %978 = vmatpush1.bf16.msra.mxu0 %v972
        %979 = vmatprep.subr.bf16.mxu0 0
        %980 = vmatpush1.bf16.msra.mxu0 0
        %981 = vmatprep.subr.bf16.mxu0 0
        %982 = vmatpush1.bf16.msra.mxu0 0
        %983 = vmatprep.subr.bf16.mxu0 0
        %984 = vmatpush1.bf16.msra.mxu0 0
        %985 = vmatprep.subr.bf16.mxu0 0
        %986 = vmatpush1.bf16.msra.mxu0 0
        %987 = vmatprep.subr.bf16.mxu0 0
        %988 = vmatpush1.bf16.msra.mxu0 0
        %989 = vmatprep.subr.bf16.mxu0 0
        %990 = vmatpush1.bf16.msra.mxu0 0
        %991 = vmatprep.subr.bf16.mxu0 0
        %992 = vmatpush1.bf16.msra.mxu0 0
        %993 = vmatprep.subr.bf16.mxu0 0
        %994 = vmatpush1.bf16.msra.mxu0 0
        %995 = vmatprep.subr.bf16.mxu0 0
        %996 = vmatpush1.bf16.msra.mxu0 0
        %997 = vmatprep.subr.bf16.mxu0 0
        %998 = vmatpush1.bf16.msra.mxu0 0
        %999 = vmatprep.subr.bf16.mxu0 0
        %1000 = vmatpush1.bf16.msra.mxu0 0
        %1001 = vmatprep.subr.bf16.mxu0 0
        %1002 = vmatpush1.bf16.msra.mxu0 0
        %1003 = vmatprep.subr.bf16.mxu0 0
        %1004 = vmatpush1.bf16.msra.mxu0 0
        %1005 = vmatprep.subr.bf16.mxu0 0
        %1006 = vmatpush1.bf16.msra.mxu0 0
        %1007 = vmatprep.subr.bf16.mxu0 0
        %1008 = vmatpush1.bf16.msra.mxu0 0
        %1009 = vmatprep.mubr.bf16.mxu0 0
        %1010 = vmatmul.mubr.bf16.gmra.mrb[0].mxu0 %v975
        %v1011 = vpop.f32.mrb[0].mxu0
        %v1012 = vadd.f32 0.0, %v1011
        %v1013 = vpop.f32.mrb[0].mxu0
        %v1014 = vpop.f32.mrb[0].mxu0
        %v1015 = vpop.f32.mrb[0].mxu0
        %1016 = vdwg.mxu0
        %v1017 = vadd.f32 %v797, %v1012
        %1018 = vst.msk [vmem:[%s321] sm:$0xff] %vm350, %v1017
        %s1019 = sand.u32 %s194, 1
        %s1020 = scalar_lea.sflag [#allocation5], %s1019
        %s1021 = sand.u32 %s194, 1
        %s1022 = smul.addr %s1021, 8
        %s1023 = scalar_lea.vmem [#allocation6], %s1022
        // Predicated region
        $region53: #{tpu_custom_call.1} parent=47 // pred_check
          %p1024 = pneg %p204
        $region54: #{tpu_custom_call.1} parent=47 // pred_check_branch
          %1026 = sbr.rel (%p1024) target = $region56
        $region55: #{tpu_custom_call.1} parent=47 // pred_region
          %s1028 = ssub.s32 128, 128
          %1029 = vsyncadd %s1020, %s1028
          %s1030 = smul.addr %s24, 128
          %s1031 = scalar_lea.hbm %s7, %s1030
          %s1033 = sshll.u32 %s1023, 4
          %s1034 = int_to_ptr.vmem [resolvable:$true] %s1033
          %1036 = dma.vmem_to_hbm [thread:$0]  %s1034, 128, %s1031, %s1020
        $region56: #{tpu_custom_call.1} parent=47 // pred_fallthru
          _
      $region48: #{tpu_custom_call.1} parent=5 // pred_fallthru
        _
      %p1037 = scmp.le.s32.totalorder 2, %s19
      // Predicated region
      $region57: #{tpu_custom_call.1} parent=5 // pred_check
        %p1038 = pneg %p1037
      $region58: #{tpu_custom_call.1} parent=5 // pred_check_branch
        %1040 = sbr.rel (%p1038) target = $region60
      $region59: #{tpu_custom_call.1} parent=5 // pred_region
        %s1041 = ssub.s32 %s19, 2
        // Predicated region
        $region61: #{tpu_custom_call.1} parent=59 // pred_check
          %p1042 = pneg %p210
        $region62: #{tpu_custom_call.1} parent=59 // pred_check_branch
          %1044 = sbr.rel (%p1042) target = $region64
        $region63: #{tpu_custom_call.1} parent=59 // pred_region
          %s1045 = sand.u32 %s195, 1
          %s1046 = scalar_lea.sflag [#allocation5], %s1045
          %s1047 = sand.u32 %s195, 1
          %s1048 = smul.addr %s1047, 8
          %s1049 = scalar_lea.vmem [#allocation6], %s1048
          %1050 = dma.done %s1046, 128
        $region64: #{tpu_custom_call.1} parent=59 // pred_fallthru
          _
      $region60: #{tpu_custom_call.1} parent=5 // pred_fallthru
        _
    $region6: #{tpu_custom_call.1} parent=1 // loop_footer
      %s23 = sadd.s32 1, %s19
    $region7: #{tpu_custom_call.1} parent=1 // loop_footer_branch
      %18 = sbr.rel target = $region3
    $region8: #{tpu_custom_call.1} parent=1 // loop_exit
      _
    %1051 = vsyncpa [#allocation4], 1
    %s1052 = scalar_lea.sflag [#allocation4], 1
    %1053 = vsyncpa %s1052, 1
    %1054 = vsyncpa [#allocation5], 1
    %s1055 = scalar_lea.sflag [#allocation5], 1
    %1056 = vsyncpa %s1055, 1

</llo_original>
